<compile_context>
chip_gen: v7x
topology: tpu7x:2x2x1
jax: 0.10.0
libtpu: 0.0.40
codegen_flags: <defaults>
</compile_context>

<pallas_src>
import jax
import jax.numpy as jnp
from jax import lax
from jax.experimental import pallas as pl
from jax.experimental.pallas import tpu as pltpu

_LANE = 128


def _default_rows_target():
    # ~1 MiB/plane/step (2048 rows) on v5e/v6e, ~2 MiB/plane/step (4096 rows) on v7x's
    # faster HBM; both fit comfortably under the default scoped-VMEM limits when
    # double-buffered (3 planes per step).
    try:
        kind = jax.devices()[0].device_kind.lower()
    except Exception:
        return 2048
    if "v7" in kind:
        return 4096
    return 2048


def _make_kernel(tile_rows, total_rows, ragged):
    """Build the kernel with static tiling facts baked in (no runtime cost when not ragged)."""

    def kernel(pred_ref, label_ref, out_ref, loss_acc, w_acc):
        r = pl.program_id(1)

        @pl.when(r == 0)
        def _():
            loss_acc[...] = jnp.zeros_like(loss_acc)
            w_acc[...] = jnp.zeros_like(w_acc)

        # pred_ref block: (Bt, 1, tile_rows, 128); label_ref block: (Bt, 2, tile_rows, 128)
        pred0 = pred_ref[:, 0, :, :].astype(jnp.float32)   # h_pred[:, 0]
        lbl0 = label_ref[:, 0, :, :].astype(jnp.float32)   # h_label[:, 0]
        lbl1 = label_ref[:, 1, :, :].astype(jnp.float32)   # h_label[:, 1]

        denom = lbl0 + jnp.float32(1e-10)
        # Fused single divide: |(pred0 - lbl0)/denom| == |pred0/denom - lbl0/denom|
        diff = jnp.abs((pred0 - lbl0) / denom)
        # SmoothL1, beta = 1.0, reduction='none'
        sl1 = jnp.where(diff < 1.0, jnp.float32(0.5) * diff * diff, diff - jnp.float32(0.5))

        contrib = lbl1 * sl1
        weight = lbl1

        if ragged:
            # Mask rows of the last (partial) tile that fall past the padded array.  The mask
            # is applied to BOTH terms so garbage (possibly NaN/Inf after the divide) in the
            # out-of-bounds region can never leak into the sums.
            row = lax.broadcasted_iota(jnp.int32, contrib.shape, contrib.ndim - 2)
            valid = (r * tile_rows + row) < total_rows
            contrib = jnp.where(valid, contrib, jnp.float32(0.0))
            weight = jnp.where(valid, weight, jnp.float32(0.0))

        # Tree-reduce the (Bt*tile_rows, 128) products down to one (8,128) vreg in registers
        # (pure VALU adds over the major axis), then a single read-modify-write per scratch.
        loss_acc[...] += jnp.sum(contrib.reshape(-1, 8, _LANE), axis=0)
        w_acc[...] += jnp.sum(weight.reshape(-1, 8, _LANE), axis=0)

        @pl.when(r == pl.num_programs(1) - 1)
        def _():
            out_ref[0, 0] = jnp.sum(loss_acc[...])
            out_ref[0, 1] = jnp.sum(w_acc[...])

    return kernel


def reg_pos(h_pred, h_label, *, rows_target=None):
    """h_pred: (B, Cp>=1, H, W), h_label: (B, Cl>=2, H, W). Returns scalar f32."""
    B, Cp, H, W = h_pred.shape
    Bl, Cl, Hl, Wl = h_label.shape
    assert Cl >= 2, "label needs at least 2 channels (target, weight)"
    assert (B, H, W) == (Bl, Hl, Wl)

    if rows_target is None:
        rows_target = _default_rows_target()
    rows_target = max(8, (int(rows_target) // 8) * 8)   # keep (8,128) tiling clean

    S = H * W
    r_min = pl.cdiv(S, _LANE)            # ceil(S / 128)
    rows = ((r_min + 7) // 8) * 8        # pad rows only to the sublane (8) boundary
    s_pad = rows * _LANE

    if s_pad != S:
        # Slice to the channels the kernel actually reads BEFORE padding, so the pad copy
        # only touches 3 channel planes (not all Cp + Cl planes).  Zero padding is exact:
        # pred=0, lbl0=0 -> diff=0, and the weight channel is 0 there.
        pred = h_pred[:, 0:1].reshape(B, 1, S)
        label = h_label[:, 0:2].reshape(B, 2, S)
        pred = jnp.pad(pred, ((0, 0), (0, 0), (0, s_pad - S)))
        label = jnp.pad(label, ((0, 0), (0, 0), (0, s_pad - S)))
        pred = pred.reshape(B, 1, rows, _LANE)
        label = label.reshape(B, 2, rows, _LANE)
    else:
        # Fully zero-copy path: the reshape is free on contiguous NCHW and the BlockSpecs
        # below DMA only channel 0 of pred and channels 0..1 of label.
        pred = h_pred.reshape(B, Cp, rows, _LANE)
        label = h_label.reshape(B, Cl, rows, _LANE)

    if rows <= rows_target:
        # Small spatial extent: one row tile; block the batch dim so each grid step still
        # moves a meaningful amount of data (Bt chosen as the largest divisor of B that
        # keeps Bt*rows <= rows_target).
        tile_rows = rows
        n_row_tiles = 1
        bt_max = max(1, rows_target // rows)
        bt = 1
        for d in range(min(B, bt_max), 0, -1):
            if B % d == 0:
                bt = d
                break
    else:
        tile_rows = rows_target
        n_row_tiles = pl.cdiv(rows, tile_rows)
        bt = 1

    ragged = (rows % tile_rows) != 0
    n_batch_tiles = B // bt

    kernel = _make_kernel(tile_rows=tile_rows, total_rows=rows, ragged=ragged)

    partials = pl.pallas_call(
        kernel,
        out_shape=jax.ShapeDtypeStruct((n_batch_tiles, 2), jnp.float32),
        grid_spec=pltpu.PrefetchScalarGridSpec(
            num_scalar_prefetch=0,
            grid=(n_batch_tiles, n_row_tiles),
            in_specs=[
                # pred: only channel 0 is ever DMA'd.
                pl.BlockSpec((bt, 1, tile_rows, _LANE), lambda b, r: (b, 0, r, 0)),
                # label: only channels 0..1 are DMA'd (contiguous in NCHW).
                pl.BlockSpec((bt, 2, tile_rows, _LANE), lambda b, r: (b, 0, r, 0)),
            ],
            # Per-batch-tile partial (loss_sum, weight_sum); written once, at the last row tile.
            out_specs=pl.BlockSpec(
                (1, 2), lambda b, r: (b, 0), memory_space=pltpu.SMEM
            ),
            scratch_shapes=[
                pltpu.VMEM((8, _LANE), jnp.float32),  # loss accumulator (single vreg)
                pltpu.VMEM((8, _LANE), jnp.float32),  # weight accumulator (single vreg)
            ],
        ),
        compiler_params=pltpu.CompilerParams(
            # Batch-tile axis parallel (2 TCs on v7x); row-tile reduction axis arbitrary.
            dimension_semantics=("parallel", "arbitrary"),
        ),
    )(pred, label)

    loss_sum = jnp.sum(partials[:, 0])
    w_sum = jnp.sum(partials[:, 1])
    return loss_sum / jnp.maximum(jnp.float32(1.0), w_sum)


def reg_pos_ref(h_pred, h_label):
    """Pure-JAX reference mirroring the PyTorch module (two explicit divisions)."""
    denom = h_label[:, 0, :, :] + 1e-10
    x = h_pred[:, 0, :, :] / denom
    y = h_label[:, 0, :, :] / denom
    d = jnp.abs(x - y)
    sl1 = jnp.where(d < 1.0, 0.5 * d * d, d - 0.5)
    l1 = h_label[:, 1, :, :] * sl1
    return jnp.sum(l1) / jnp.maximum(1.0, jnp.sum(h_label[:, 1, :, :]))


def _make_inputs(key, B, Cp, Cl, H, W):
    k1, k2, k3, k4 = jax.random.split(key, 4)
    h_pred = jax.random.normal(k1, (B, Cp, H, W), dtype=jnp.float32)
    lbl0 = jax.random.uniform(k2, (B, 1, H, W), dtype=jnp.float32, minval=0.1, maxval=2.0)
    lbl1 = (jax.random.uniform(k3, (B, 1, H, W), dtype=jnp.float32) > 0.5).astype(jnp.float32)
    extra = jax.random.normal(k4, (B, max(Cl - 2, 0), H, W), dtype=jnp.float32)
    h_label = jnp.concatenate([lbl0, lbl1, extra], axis=1) if Cl > 2 else jnp.concatenate(
        [lbl0, lbl1], axis=1)
    return h_pred, h_label


if __name__ == "__main__":
    key = jax.random.PRNGKey(0)
    k_a, k_b, k_c = jax.random.split(key, 3)

    # 1) Small spatial input -> lane padding + batch-blocked single-tile path.
    p1, l1 = _make_inputs(k_a, B=2, Cp=4, Cl=2, H=16, W=16)
    out1 = reg_pos(p1, l1)
    jax.block_until_ready(out1)
    assert jnp.allclose(out1, reg_pos_ref(p1, l1), rtol=1e-5, atol=1e-5), (out1, reg_pos_ref(p1, l1))

    # 2) Forced small row-tile -> multi-tile grid with a ragged (masked) last tile, odd batch.
    p2, l2 = _make_inputs(k_b, B=3, Cp=1, Cl=2, H=64, W=60)
    out2 = reg_pos(p2, l2, rows_target=24)
    jax.block_until_ready(out2)
    assert jnp.allclose(out2, reg_pos_ref(p2, l2), rtol=1e-5, atol=1e-5), (out2, reg_pos_ref(p2, l2))

    # 3) H*W multiple of 1024 -> fully zero-copy path (channel selection purely via BlockSpec).
    p3, l3 = _make_inputs(k_c, B=2, Cp=3, Cl=4, H=32, W=32)
    out3 = reg_pos(p3, l3)
    jax.block_until_ready(out3)
    assert jnp.allclose(out3, reg_pos_ref(p3, l3), rtol=1e-5, atol=1e-5), (out3, reg_pos_ref(p3, l3))

    print("KERNEL_OK")
</pallas_src>

<mosaic_0001>
module attributes {stable_mosaic.version = 11 : i64} {
  func.func @kernel(%arg0: i32, %arg1: i32, %arg2: memref<2x1x8x128xf32, #tpu.memory_space<vmem>>, %arg3: memref<2x2x8x128xf32, #tpu.memory_space<vmem>>, %arg4: memref<1x2xf32, #tpu.memory_space<smem>>, %arg5: memref<8x128xf32, #tpu.memory_space<vmem>>, %arg6: memref<8x128xf32, #tpu.memory_space<vmem>>) attributes {dimension_semantics = [#tpu.dimension_semantics<parallel>, #tpu.dimension_semantics<arbitrary>], iteration_bounds = array<i64: 1, 1>, scalar_prefetch = 0 : i64, scratch_operands = 2 : i64, tpu.core_type = #tpu.core_type<tc>, window_params = [{transform_indices = @transform_0, window_bounds = array<i64: 2, 1, 8, 128>}, {transform_indices = @transform_1, window_bounds = array<i64: 2, 2, 8, 128>}, {transform_indices = @transform_2, window_bounds = array<i64: 1, 2>}]} {
    %c0_i32 = arith.constant 0 : i32
    %0 = arith.cmpi eq, %arg1, %c0_i32 : i32
    %1 = arith.extui %0 : i1 to i32
    %c0_i32_0 = arith.constant 0 : i32
    %2 = arith.cmpi ne, %1, %c0_i32_0 : i32
    scf.if %2 {
      %cst_26 = arith.constant 0.000000e+00 : f32
      %34 = vector.broadcast %cst_26 : f32 to vector<8x128xf32>
      %c0_27 = arith.constant 0 : index
      %c0_28 = arith.constant 0 : index
      %35 = vector.load %arg5[%c0_27, %c0_28] : memref<8x128xf32, #tpu.memory_space<vmem>>, vector<8x128xf32>
      tpu.vector_store %arg5[%c0_27, %c0_28], %34 {strides = array<i32>} : memref<8x128xf32, #tpu.memory_space<vmem>>, vector<8x128xf32>,
      %cst_29 = arith.constant 0.000000e+00 : f32
      %36 = vector.broadcast %cst_29 : f32 to vector<8x128xf32>
      %c0_30 = arith.constant 0 : index
      %c0_31 = arith.constant 0 : index
      %37 = vector.load %arg6[%c0_30, %c0_31] : memref<8x128xf32, #tpu.memory_space<vmem>>, vector<8x128xf32>
      tpu.vector_store %arg6[%c0_30, %c0_31], %36 {strides = array<i32>} : memref<8x128xf32, #tpu.memory_space<vmem>>, vector<8x128xf32>,
    } else {
    }
    %c0 = arith.constant 0 : index
    %c0_1 = arith.constant 0 : index
    %c0_2 = arith.constant 0 : index
    %c0_3 = arith.constant 0 : index
    %3 = vector.load %arg2[%c0, %c0_1, %c0_2, %c0_3] : memref<2x1x8x128xf32, #tpu.memory_space<vmem>>, vector<2x1x8x128xf32>
    %4 = vector.shape_cast %3 : vector<2x1x8x128xf32> to vector<2x8x128xf32>
    %c0_4 = arith.constant 0 : index
    %c0_5 = arith.constant 0 : index
    %c0_6 = arith.constant 0 : index
    %c0_7 = arith.constant 0 : index
    %5 = vector.load %arg3[%c0_4, %c0_5, %c0_6, %c0_7] : memref<2x2x8x128xf32, #tpu.memory_space<vmem>>, vector<2x1x8x128xf32>
    %6 = vector.shape_cast %5 : vector<2x1x8x128xf32> to vector<2x8x128xf32>
    %c0_8 = arith.constant 0 : index
    %c1 = arith.constant 1 : index
    %c0_9 = arith.constant 0 : index
    %c0_10 = arith.constant 0 : index
    %7 = vector.load %arg3[%c0_8, %c1, %c0_9, %c0_10] : memref<2x2x8x128xf32, #tpu.memory_space<vmem>>, vector<2x1x8x128xf32>
    %8 = vector.shape_cast %7 : vector<2x1x8x128xf32> to vector<2x8x128xf32>
    %cst = arith.constant 1.000000e-10 : f32
    %9 = vector.broadcast %cst : f32 to vector<2x8x128xf32>
    %10 = arith.addf %6, %9 : vector<2x8x128xf32>
    %11 = arith.subf %4, %6 : vector<2x8x128xf32>
    %12 = arith.divf %11, %10 : vector<2x8x128xf32>
    %13 = math.absf %12 : vector<2x8x128xf32>
    %cst_11 = arith.constant 1.000000e+00 : f32
    %14 = vector.broadcast %cst_11 : f32 to vector<2x8x128xf32>
    %15 = arith.cmpf olt, %13, %14 : vector<2x8x128xf32>
    %cst_12 = arith.constant 5.000000e-01 : f32
    %16 = vector.broadcast %cst_12 : f32 to vector<2x8x128xf32>
    %17 = arith.mulf %16, %13 : vector<2x8x128xf32>
    %18 = arith.mulf %17, %13 : vector<2x8x128xf32>
    %cst_13 = arith.constant 5.000000e-01 : f32
    %19 = vector.broadcast %cst_13 : f32 to vector<2x8x128xf32>
    %20 = arith.subf %13, %19 : vector<2x8x128xf32>
    %21 = arith.select %15, %18, %20 : vector<2x8x128xi1>, vector<2x8x128xf32>
    %22 = arith.mulf %8, %21 : vector<2x8x128xf32>
    %c0_14 = arith.constant 0 : index
    %c0_15 = arith.constant 0 : index
    %23 = vector.load %arg5[%c0_14, %c0_15] : memref<8x128xf32, #tpu.memory_space<vmem>>, vector<8x128xf32>
    %cst_16 = arith.constant dense<0.000000e+00> : vector<8x128xf32>
    %24 = vector.multi_reduction <add>, %22, %cst_16 [0] : vector<2x8x128xf32> to vector<8x128xf32>
    %25 = arith.addf %23, %24 : vector<8x128xf32>
    %c0_17 = arith.constant 0 : index
    %c0_18 = arith.constant 0 : index
    %26 = vector.load %arg5[%c0_17, %c0_18] : memref<8x128xf32, #tpu.memory_space<vmem>>, vector<8x128xf32>
    tpu.vector_store %arg5[%c0_17, %c0_18], %25 {strides = array<i32>} : memref<8x128xf32, #tpu.memory_space<vmem>>, vector<8x128xf32>,
    %c0_19 = arith.constant 0 : index
    %c0_20 = arith.constant 0 : index
    %27 = vector.load %arg6[%c0_19, %c0_20] : memref<8x128xf32, #tpu.memory_space<vmem>>, vector<8x128xf32>
    %cst_21 = arith.constant dense<0.000000e+00> : vector<8x128xf32>
    %28 = vector.multi_reduction <add>, %8, %cst_21 [0] : vector<2x8x128xf32> to vector<8x128xf32>
    %29 = arith.addf %27, %28 : vector<8x128xf32>
    %c0_22 = arith.constant 0 : index
    %c0_23 = arith.constant 0 : index
    %30 = vector.load %arg6[%c0_22, %c0_23] : memref<8x128xf32, #tpu.memory_space<vmem>>, vector<8x128xf32>
    tpu.vector_store %arg6[%c0_22, %c0_23], %29 {strides = array<i32>} : memref<8x128xf32, #tpu.memory_space<vmem>>, vector<8x128xf32>,
    %c0_i32_24 = arith.constant 0 : i32
    %31 = arith.cmpi eq, %arg1, %c0_i32_24 : i32
    %32 = arith.extui %31 : i1 to i32
    %c0_i32_25 = arith.constant 0 : i32
    %33 = arith.cmpi ne, %32, %c0_i32_25 : i32
    scf.if %33 {
      %c0_26 = arith.constant 0 : index
      %c0_27 = arith.constant 0 : index
      %34 = vector.load %arg5[%c0_26, %c0_27] : memref<8x128xf32, #tpu.memory_space<vmem>>, vector<8x128xf32>
      %35 = vector.shape_cast %34 : vector<8x128xf32> to vector<1x8x128xf32>
      %cst_28 = arith.constant dense<0.000000e+00> : vector<1xf32>
      %36 = vector.multi_reduction <add>, %35, %cst_28 [1, 2] : vector<1x8x128xf32> to vector<1xf32>
      %37 = vector.shape_cast %36 : vector<1xf32> to vector<1x1x1xf32>
      %38 = vector.extract %37[0, 0, 0] : f32 from vector<1x1x1xf32>
      %c0_29 = arith.constant 0 : index
      %c0_30 = arith.constant 0 : index
      %39 = memref.load %arg4[%c0_29, %c0_30] : memref<1x2xf32, #tpu.memory_space<smem>>
      memref.store %38, %arg4[%c0_29, %c0_30] : memref<1x2xf32, #tpu.memory_space<smem>>
      %c0_31 = arith.constant 0 : index
      %c0_32 = arith.constant 0 : index
      %40 = vector.load %arg6[%c0_31, %c0_32] : memref<8x128xf32, #tpu.memory_space<vmem>>, vector<8x128xf32>
      %41 = vector.shape_cast %40 : vector<8x128xf32> to vector<1x8x128xf32>
      %cst_33 = arith.constant dense<0.000000e+00> : vector<1xf32>
      %42 = vector.multi_reduction <add>, %41, %cst_33 [1, 2] : vector<1x8x128xf32> to vector<1xf32>
      %43 = vector.shape_cast %42 : vector<1xf32> to vector<1x1x1xf32>
      %44 = vector.extract %43[0, 0, 0] : f32 from vector<1x1x1xf32>
      %c0_34 = arith.constant 0 : index
      %c1_35 = arith.constant 1 : index
      %45 = memref.load %arg4[%c0_34, %c1_35] : memref<1x2xf32, #tpu.memory_space<smem>>
      memref.store %44, %arg4[%c0_34, %c1_35] : memref<1x2xf32, #tpu.memory_space<smem>>
    } else {
    }
    return
  }
  func.func @transform_0(%arg0: i32, %arg1: i32) -> (i32, i32, i32, i32) {
    %c0_i32 = arith.constant 0 : i32
    %c0_i32_0 = arith.constant 0 : i32
    %c0_i32_1 = arith.constant 0 : i32
    return %arg0, %c0_i32, %arg1, %c0_i32_0 : i32, i32, i32, i32
  }
  func.func @transform_1(%arg0: i32, %arg1: i32) -> (i32, i32, i32, i32) {
    %c0_i32 = arith.constant 0 : i32
    %c0_i32_0 = arith.constant 0 : i32
    %c0_i32_1 = arith.constant 0 : i32
    return %arg0, %c0_i32, %arg1, %c0_i32_0 : i32, i32, i32, i32
  }
  func.func @transform_2(%arg0: i32, %arg1: i32) -> (i32, i32) {
    %c0_i32 = arith.constant 0 : i32
    %c0_i32_0 = arith.constant 0 : i32
    return %arg0, %c0_i32 : i32, i32
  }
}

</mosaic_0001>

<llo_original>
// kernel: tpu_custom_call.1
$region0: #{tpu_custom_call.1}
  #allocation0 [shape = 'u32[]', space=smem, size = 0x4, offset = 0x4, fixed_abs, tag = 'smem constant byte address 0x4 - core index']
  #allocation1 [shape = 'u32[144,128]{1,0:T(1,128)}', space=vmem, size = 0x12000, scoped, tag = 'internal scratch']
  #allocation2 [shape = 'f32[8,128]{1,0:T(8,128)}', space=vmem, size = 0x1000, scoped, tag = 'scratch operand']
  #allocation3 [shape = 'f32[8,128]{1,0:T(8,128)}', space=vmem, size = 0x1000, scoped, tag = 'scratch operand']
  %s0 = inlined_call_operand.hbm [shape: f32[2,1,8,128], index: 0, kind: input, shape index: {}]
  %s1 = inlined_call_operand.hbm [shape: f32[2,2,8,128], index: 1, kind: input, shape index: {}]
  %s2 = inlined_call_operand.hbm [shape: f32[1,2], index: 2, kind: output, shape index: {}]
  %s3 = sld [smem:[#allocation0]]
  $region34: #{tpu_custom_call.1} parent=0
    _
  %s5 = ssub.s32 1, %s3
  %s6 = scalar_select 0, %s5, %s3
  $region1: #{tpu_custom_call.1} parent=0
    #allocation4 [shape = 'u8[8192]{0}', space=vmem, size = 0x2000, scoped, tag = 'input window, operand 0, single buffered']
    #allocation5 [shape = 's32[1]{0}', space=sflag, size = 0x4, scoped, tag = 'scoped memory for tpu_custom_call.1']
    #allocation6 [shape = 's32[1]{0}', space=sflag, size = 0x4, scoped, tag = 'scoped memory for tpu_custom_call.1']
    #allocation7 [shape = 'u8[16384]{0}', space=vmem, size = 0x4000, scoped, tag = 'input window, operand 1, single buffered']
    #allocation8 [shape = 's32[1]{0}', space=sflag, size = 0x4, scoped, tag = 'scoped memory for tpu_custom_call.1']
    #allocation9 [shape = 'u8[512]{0}', space=smem, size = 0x200, scoped, tag = 'output window, operand 0, single buffered']
    %7 = vsyncpa [#allocation5], 0
    %8 = vsyncpa [#allocation8], 0
    %9 = vsyncpa [#allocation6], 0
    // Predicated region
    $region2: #{tpu_custom_call.1} parent=1 // pred_check
      _
    $region3: #{tpu_custom_call.1} parent=1 // pred_check_branch
      %11 = sbr.rel (0) target = $region5
    $region4: #{tpu_custom_call.1} parent=1 // pred_region
      %s13 = ssub.s32 256, 256
      %14 = vsyncadd [#allocation5], %s13
      %s15 = sshll.u32 [#allocation4], 4
      %s16 = int_to_ptr.vmem [resolvable:$true] %s15
      %21 = dma.hbm_to_vmem [thread:$0]  %s0, 256, %s16, [#allocation5], 128, 128, 8
    $region5: #{tpu_custom_call.1} parent=1 // pred_fallthru
      _
    // Predicated region
    $region6: #{tpu_custom_call.1} parent=1 // pred_check
      _
    $region7: #{tpu_custom_call.1} parent=1 // pred_check_branch
      %23 = sbr.rel (0) target = $region9
    $region8: #{tpu_custom_call.1} parent=1 // pred_region
      %s25 = ssub.s32 512, 512
      %26 = vsyncadd [#allocation8], %s25
      %s27 = sshll.u32 [#allocation7], 4
      %s28 = int_to_ptr.vmem [resolvable:$true] %s27
      %33 = dma.hbm_to_vmem [thread:$0]  %s1, 512, %s28, [#allocation8], 128, 128, 8
    $region9: #{tpu_custom_call.1} parent=1 // pred_fallthru
      _
    // Predicated region
    $region10: #{tpu_custom_call.1} parent=1 // pred_check
      _
    $region11: #{tpu_custom_call.1} parent=1 // pred_check_branch
      %35 = sbr.rel (0) target = $region13
    $region12: #{tpu_custom_call.1} parent=1 // pred_region
      %36 = dma.done [#allocation5], 256
    $region13: #{tpu_custom_call.1} parent=1 // pred_fallthru
      _
    // Predicated region
    $region14: #{tpu_custom_call.1} parent=1 // pred_check
      _
    $region15: #{tpu_custom_call.1} parent=1 // pred_check_branch
      %38 = sbr.rel (0) target = $region17
    $region16: #{tpu_custom_call.1} parent=1 // pred_region
      %39 = dma.done [#allocation8], 512
    $region17: #{tpu_custom_call.1} parent=1 // pred_fallthru
      _
    %p40 = scmp.eq.s32.totalorder 0, 0
    // Predicated region
    $region18: #{tpu_custom_call.1} parent=1 // pred_check
      %p41 = pneg %p40
    $region19: #{tpu_custom_call.1} parent=1 // pred_check_branch
      %43 = sbr.rel (%p41) target = $region21
    $region20: #{tpu_custom_call.1} parent=1 // pred_region
      %44 = vst [vmem:[#allocation2] sm:$0xff] 0.0
      %45 = vst [vmem:[#allocation3] sm:$0xff] 0.0
    $region21: #{tpu_custom_call.1} parent=1 // pred_fallthru
      _
    %v46 = vld [vmem:[#allocation4] sm:$0xff]
    %v47 = vld [vmem:[#allocation4 + $0x8] sm:$0xff]
    %v48 = vld [vmem:[#allocation7] sm:$0xff]
    %v49 = vld [vmem:[#allocation7 + $0x10] sm:$0xff]
    %s50 = scalar_lea.vmem [#allocation7], 8
    %v51 = vld [vmem:[%s50] sm:$0xff]
    %v52 = vld [vmem:[%s50 + $0x10] sm:$0xff]
    %v53 = vadd.f32 %v48, 1e-10
    %v54 = vadd.f32 %v49, 1e-10
    %v55 = vsub.f32 %v46, %v48
    %v56 = vsub.f32 %v47, %v49
    %v57 = vrcp.pop %v53
    %v58 = vmul.f32 %v55, %v57
    %v59 = vrcp.pop %v54
    %v60 = vmul.f32 %v56, %v59
    %v61 = vand.u32 2147483647, %v58
    %v62 = vand.u32 2147483647, %v60
    %vm63 = vcmp.lt.f32.partialorder %v61, 1.0
    %vm64 = vcmp.lt.f32.partialorder %v62, 1.0
    %v65 = vmul.f32 %v61, 0.5
    %v66 = vmul.f32 %v62, 0.5
    %v67 = vmul.f32 %v65, %v61
    %v68 = vmul.f32 %v66, %v62
    %v69 = vsub.f32 %v61, 0.5
    %v70 = vsub.f32 %v62, 0.5
    %v71 = vsel %vm63, %v67, %v69
    %v72 = vsel %vm64, %v68, %v70
    %v73 = vmul.f32 %v51, %v71
    %v74 = vmul.f32 %v52, %v72
    %v75 = vld [vmem:[#allocation2] sm:$0xff]
    %v76 = vadd.f32 %v73, %v74
    %v77 = vadd.f32 %v75, %v76
    %78 = vst [vmem:[#allocation2] sm:$0xff] %v77
    %v79 = vld [vmem:[#allocation3] sm:$0xff]
    %v80 = vadd.f32 %v51, %v52
    %v81 = vadd.f32 %v79, %v80
    %82 = vst [vmem:[#allocation3] sm:$0xff] %v81
    // Predicated region
    $region22: #{tpu_custom_call.1} parent=1 // pred_check
      %p83 = pneg %p40
    $region23: #{tpu_custom_call.1} parent=1 // pred_check_branch
      %85 = sbr.rel (%p83) target = $region25
    $region24: #{tpu_custom_call.1} parent=1 // pred_region
      %v86 = vld [vmem:[#allocation2] sm:$0xff]
      %87 = vadd.xlane.f32.xlu0 %v86
      %v88 = vpop.xlane.xlu0 %87
      %v89 = vrot.slane %v88, 4
      %v90 = vadd.f32 %v88, %v89
      %v91 = vrot.slane %v90, 2
      %v92 = vadd.f32 %v90, %v91
      %v93 = vrot.slane %v92, 1
      %v94 = vadd.f32 %v92, %v93
      %s95 = vtos %v94
      %s96 = scalar_lea.smem [#allocation9], 0
      %97 = sst [smem:[%s96]] %s95
      %v98 = vld [vmem:[#allocation3] sm:$0xff]
      %99 = vadd.xlane.f32.xlu0 %v98
      %v100 = vpop.xlane.xlu0 %99
      %v101 = vrot.slane %v100, 4
      %v102 = vadd.f32 %v100, %v101
      %v103 = vrot.slane %v102, 2
      %v104 = vadd.f32 %v102, %v103
      %v105 = vrot.slane %v104, 1
      %v106 = vadd.f32 %v104, %v105
      %s107 = vtos %v106
      %s108 = scalar_lea.smem [#allocation9], 1
      %109 = sst [smem:[%s108]] %s107
    $region25: #{tpu_custom_call.1} parent=1 // pred_fallthru
      _
    // Predicated region
    $region26: #{tpu_custom_call.1} parent=1 // pred_check
      _
    $region27: #{tpu_custom_call.1} parent=1 // pred_check_branch
      %111 = sbr.rel (0) target = $region29
    $region28: #{tpu_custom_call.1} parent=1 // pred_region
      %s113 = ssub.s32 16, 16
      %114 = vsyncadd [#allocation6], %s113
      %117 = dma.smem_to_hbm [#allocation9], 16, %s2, [#allocation6]
    $region29: #{tpu_custom_call.1} parent=1 // pred_fallthru
      _
    // Predicated region
    $region30: #{tpu_custom_call.1} parent=1 // pred_check
      _
    $region31: #{tpu_custom_call.1} parent=1 // pred_check_branch
      %119 = sbr.rel (0) target = $region33
    $region32: #{tpu_custom_call.1} parent=1 // pred_region
      %120 = dma.done [#allocation6], 16
    $region33: #{tpu_custom_call.1} parent=1 // pred_fallthru
      _
    %121 = sfence
    %122 = vsyncpa [#allocation5], 1
    %123 = vsyncpa [#allocation8], 1
    %124 = vsyncpa [#allocation6], 1

</llo_original>
